<compile_context>
chip_gen: v7x
topology: tpu7x:2x2x1
jax: 0.10.0
libtpu: 0.0.40
codegen_flags: <defaults>
</compile_context>

<pallas_src>
import math

import jax
import jax.numpy as jnp
import numpy as np
from jax.experimental import pallas as pl
from jax.experimental.pallas import tpu as pltpu


# ----------------------------------------------------------------------------
# Parameter construction (mirrors FourierLayer.__init__), deterministic,
# no file I/O.  Returns the exact module buffer: frequencies.T -> [K, F].
# ----------------------------------------------------------------------------
def make_frequencies(in_features: int, frequencies):
    if isinstance(frequencies[0], str):
        if "gaussian" in frequencies[0]:
            nr_freq = frequencies[2]
            rng = np.random.RandomState(0)  # deterministic synthetic weights
            np_f = rng.normal(0, 1, size=(nr_freq, in_features)) * frequencies[1]
        else:
            nr_freq = len(frequencies[1])
            np_f = []
            if "full" in frequencies[0]:
                np_f_i = np.meshgrid(
                    *[np.array(frequencies[1]) for _ in range(in_features)],
                    indexing="ij",
                )
                np_f.append(
                    np.reshape(
                        np.stack(np_f_i, axis=-1),
                        (nr_freq**in_features, in_features),
                    )
                )
            if "axis" in frequencies[0]:
                np_f_i = np.zeros((nr_freq, in_features, in_features))
                for i in range(in_features):
                    np_f_i[:, i, i] = np.reshape(np.array(frequencies[1]), nr_freq)
                np_f.append(np.reshape(np_f_i, (nr_freq * in_features, in_features)))
            if "diagonal" in frequencies[0]:
                np_f_i = np.reshape(np.array(frequencies[1]), (nr_freq, 1, 1))
                np_f_i = np.tile(np_f_i, (1, in_features, in_features))
                np_f_i = np.reshape(np_f_i, (nr_freq * in_features, in_features))
                np_f.append(np_f_i)
            np_f = np.concatenate(np_f, axis=-2)
    else:
        np_f = np.asarray(frequencies)
    # PyTorch: frequencies = tensor(np_f).t().contiguous()  -> [in_features, F]
    return jnp.asarray(np_f.T, dtype=jnp.float32)


# ----------------------------------------------------------------------------
# Kernel: one MXU dot on the packed block-diagonal buffer, one phase add,
# one sin(), one unmasked lane-dense store.
# ----------------------------------------------------------------------------
def _fourier_kernel(x_ref, f_ref, p_ref, o_ref):
    # x_ref: (tm, G*K)   f_ref: (G*K, G*2F)   p_ref: (1, G*2F)   o_ref: (tm, G*2F)
    acc = jnp.dot(x_ref[...], f_ref[...], preferred_element_type=jnp.float32)
    o_ref[...] = jnp.sin(acc + p_ref[...]).astype(o_ref.dtype)


def _pick_packed_tile(n_rows: int, in_w: int, out_w: int) -> int:
    """VMEM-aware packed-row tile (f32, double-buffered in/out blocks)."""
    in_lanes = pl.cdiv(max(in_w, 1), 128) * 128
    out_lanes = pl.cdiv(max(out_w, 1), 128) * 128
    bytes_per_row = (in_lanes + out_lanes) * 4 * 2  # 2x: double buffering
    budget = 16 * 1024 * 1024  # stays well under vmem_limit_bytes on v5e/v6e/v7x
    tm = min(4096, max(8, budget // bytes_per_row))
    # v7x megacore: keep >= 2 grid steps (when there is enough work) so the
    # "parallel" grid axis can shard across both TensorCores.
    if n_rows >= 16:
        tm = min(tm, pl.cdiv(n_rows, 2))
    return max(8, (tm // 8) * 8)


def fourier_layer(x: jax.Array, frequencies: jax.Array) -> jax.Array:
    """x: [..., in_features]; frequencies: [in_features, F]; returns [..., 2F]."""
    in_features, nfreq = frequencies.shape
    out_f = 2 * nfreq
    orig_shape = x.shape
    assert orig_shape[-1] == in_features
    x2 = x.reshape(-1, in_features)
    n = x2.shape[0]

    # Lane packing factor: G original rows per packed row so the output tile
    # is (near-)128-lane dense.  G=1 degenerates to the plain layout.
    G = max(1, 128 // out_f)
    pad = (-n) % G
    if pad:  # rare; only pads the tiny K-wide input, grid masks row tails anyway
        x2 = jnp.pad(x2, ((0, pad), (0, 0)))
    n_rows = (n + pad) // G
    in_w = G * in_features
    out_w = G * out_f

    # Packed, phase-shifted, block-diagonal parameter buffers (tiny, built once):
    #   out = sin(x_packed @ (2*pi * blockdiag([F|F])) + phase)
    # phase = 0 on sin lanes, pi/2 on cos lanes  ->  exact concat([sin,cos],-1)
    # layout after the free reshape back to [N, 2F].
    f_scaled = (2.0 * math.pi) * frequencies.astype(jnp.float32)        # [K, F]
    f2 = jnp.concatenate([f_scaled, f_scaled], axis=1)                  # [K, 2F]
    f_packed = jnp.kron(jnp.eye(G, dtype=jnp.float32), f2)              # [G*K, G*2F]
    phase = jnp.tile(
        jnp.concatenate(
            [jnp.zeros((nfreq,), jnp.float32),
             jnp.full((nfreq,), 0.5 * math.pi, jnp.float32)]
        ),
        (G,),
    ).reshape(1, out_w)

    x_packed = x2.reshape(n_rows, in_w)  # free contiguous reshape

    tm = _pick_packed_tile(n_rows, in_w, out_w)
    grid = (pl.cdiv(n_rows, tm),)  # partial last block masked by Pallas

    # TODO(synk): for very large F ('full'/'gaussian' modes, e.g. F=16**4) add a
    # second grid axis tiling the frequency dimension so the (tm, 2F) output
    # block fits v7x's 64 MiB VMEM; typical Fourier-feature sizes fit as-is.
    out_packed = pl.pallas_call(
        _fourier_kernel,
        out_shape=jax.ShapeDtypeStruct((n_rows, out_w), x.dtype),
        grid_spec=pltpu.PrefetchScalarGridSpec(
            num_scalar_prefetch=0,
            grid=grid,
            in_specs=[
                pl.BlockSpec((tm, in_w), lambda i: (i, 0)),
                pl.BlockSpec((in_w, out_w), lambda i: (0, 0)),
                pl.BlockSpec((1, out_w), lambda i: (0, 0)),
            ],
            out_specs=pl.BlockSpec((tm, out_w), lambda i: (i, 0)),
        ),
        compiler_params=pltpu.CompilerParams(
            dimension_semantics=("parallel",),
            vmem_limit_bytes=48 * 1024 * 1024,  # raises v5e's 16 MiB default; fits v7x
        ),
    )(x_packed, f_packed, phase)

    out = out_packed.reshape(n + pad, out_f)  # free contiguous reshape
    if pad:
        out = out[:n]
    return out.reshape(*orig_shape[:-1], out_f)


# ----------------------------------------------------------------------------
# Reference (pure JAX) — matches the PyTorch forward exactly.
# ----------------------------------------------------------------------------
def fourier_layer_ref(x, frequencies):
    x_hat = jnp.matmul(x, frequencies)
    return jnp.concatenate(
        [jnp.sin(2.0 * math.pi * x_hat), jnp.cos(2.0 * math.pi * x_hat)], axis=-1
    )


if __name__ == "__main__":
    in_features = 4
    # FourierLayer(in_features=4, frequencies=("axis", [1., 2., 4., 8.]))
    freqs = make_frequencies(in_features, ("axis", [1.0, 2.0, 4.0, 8.0]))  # [4, 16]

    key = jax.random.PRNGKey(0)
    k1, k2 = jax.random.split(key)

    # Small point-cloud style input: (batch=2, points=100, in_features=4).
    x = jax.random.normal(k1, (2, 100, in_features), dtype=jnp.float32)
    out = jax.block_until_ready(fourier_layer(x, freqs))
    ref = fourier_layer_ref(x, freqs)
    assert out.shape == (2, 100, 2 * freqs.shape[1]), out.shape
    assert jnp.allclose(out, ref, atol=2e-4, rtol=1e-5), "mismatch vs reference"

    # Second check exercising the N % G != 0 (row-padding) path.
    xb = jax.random.normal(k2, (3, 101, in_features), dtype=jnp.float32)
    outb = jax.block_until_ready(fourier_layer(xb, freqs))
    refb = fourier_layer_ref(xb, freqs)
    assert outb.shape == (3, 101, 2 * freqs.shape[1]), outb.shape
    assert jnp.allclose(outb, refb, atol=2e-4, rtol=1e-5), "mismatch vs reference (pad path)"

    print("KERNEL_OK")
</pallas_src>

<mosaic_0001>
module attributes {stable_mosaic.version = 11 : i64} {
  func.func @_fourier_kernel(%arg0: i32, %arg1: memref<24x16xf32, #tpu.memory_space<vmem>>, %arg2: memref<16x128xf32, #tpu.memory_space<vmem>>, %arg3: memref<1x128xf32, #tpu.memory_space<vmem>>, %arg4: memref<24x128xf32, #tpu.memory_space<vmem>>) attributes {dimension_semantics = [#tpu.dimension_semantics<parallel>], iteration_bounds = array<i64: 3>, scalar_prefetch = 0 : i64, scratch_operands = 0 : i64, tpu.core_type = #tpu.core_type<tc>, window_params = [{transform_indices = @transform_0, window_bounds = array<i64: 24, 16>}, {pipeline_mode = #tpu.pipeline_mode<synchronous>, transform_indices = @transform_1, window_bounds = array<i64: 16, 128>}, {pipeline_mode = #tpu.pipeline_mode<synchronous>, transform_indices = @transform_2, window_bounds = array<i64: 1, 128>}, {transform_indices = @transform_3, window_bounds = array<i64: 24, 128>}]} {
    %c0 = arith.constant 0 : index
    %c0_0 = arith.constant 0 : index
    %0 = vector.load %arg1[%c0, %c0_0] : memref<24x16xf32, #tpu.memory_space<vmem>>, vector<24x16xf32>
    %c0_1 = arith.constant 0 : index
    %c0_2 = arith.constant 0 : index
    %1 = vector.load %arg2[%c0_1, %c0_2] : memref<16x128xf32, #tpu.memory_space<vmem>>, vector<16x128xf32>
    %cst = arith.constant dense<0.000000e+00> : vector<24x128xf32>
    %2 = tpu.matmul %0, %1, %cst {dimension_numbers = #tpu.dot_dimension_numbers<[1], [0], [0], [1], [0, 0, 1, 1], [], []>} : vector<24x16xf32>, vector<16x128xf32>, vector<24x128xf32> -> vector<24x128xf32>
    %c0_3 = arith.constant 0 : index
    %c0_4 = arith.constant 0 : index
    %3 = vector.load %arg3[%c0_3, %c0_4] : memref<1x128xf32, #tpu.memory_space<vmem>>, vector<1x128xf32>
    %4 = vector.broadcast %3 : vector<1x128xf32> to vector<24x128xf32>
    %5 = arith.addf %2, %4 : vector<24x128xf32>
    %6 = math.sin %5 : vector<24x128xf32>
    %c0_5 = arith.constant 0 : index
    %c0_6 = arith.constant 0 : index
    %7 = vector.load %arg4[%c0_5, %c0_6] : memref<24x128xf32, #tpu.memory_space<vmem>>, vector<24x128xf32>
    tpu.vector_store %arg4[%c0_5, %c0_6], %6 {strides = array<i32>} : memref<24x128xf32, #tpu.memory_space<vmem>>, vector<24x128xf32>,
    return
  }
  func.func @transform_0(%arg0: i32) -> (i32, i32) {
    %c0_i32 = arith.constant 0 : i32
    %c0_i32_0 = arith.constant 0 : i32
    return %arg0, %c0_i32 : i32, i32
  }
  func.func @transform_1(%arg0: i32) -> (i32, i32) {
    %c0_i32 = arith.constant 0 : i32
    %c0_i32_0 = arith.constant 0 : i32
    %c0_i32_1 = arith.constant 0 : i32
    return %c0_i32, %c0_i32_0 : i32, i32
  }
  func.func @transform_2(%arg0: i32) -> (i32, i32) {
    %c0_i32 = arith.constant 0 : i32
    %c0_i32_0 = arith.constant 0 : i32
    %c0_i32_1 = arith.constant 0 : i32
    return %c0_i32, %c0_i32_0 : i32, i32
  }
  func.func @transform_3(%arg0: i32) -> (i32, i32) {
    %c0_i32 = arith.constant 0 : i32
    %c0_i32_0 = arith.constant 0 : i32
    return %arg0, %c0_i32 : i32, i32
  }
}

</mosaic_0001>

<llo_original>
// kernel: tpu_custom_call.1
$region0: #{tpu_custom_call.1}
  #allocation0 [shape = 'u32[]', space=smem, size = 0x4, offset = 0x4, fixed_abs, tag = 'smem constant byte address 0x4 - core index']
  #allocation1 [shape = 'u32[144,128]{1,0:T(1,128)}', space=vmem, size = 0x12000, scoped, tag = 'internal scratch']
  %s0 = inlined_call_operand.vmem [shape: f32[50,16], index: 0, kind: input, shape index: {}]
  %s1 = inlined_call_operand.vmem [shape: f32[16,128], index: 1, kind: input, shape index: {}]
  %s2 = inlined_call_operand.vmem [shape: f32[1,128], index: 2, kind: input, shape index: {}]
  %s3 = inlined_call_operand.hbm [shape: f32[50,128], index: 3, kind: output, shape index: {}]
  %s4 = sld [smem:[#allocation0]]
  $region45: #{tpu_custom_call.1} parent=0
    _
  %s6 = ssub.s32 1, %s4
  %s7 = scalar_select 0, %s6, %s4
  $region1: #{tpu_custom_call.1} parent=0
    #allocation2 [shape = 'u8[24576]{0}', space=vmem, size = 0x6000, scoped, tag = 'output window, operand 0']
    #allocation3 [shape = 's32[2]{0}', space=sflag, size = 0x8, scoped, tag = 'scoped memory for tpu_custom_call.1']
    %8 = vsyncpa [#allocation3], 0
    %s9 = scalar_lea.sflag [#allocation3], 1
    %10 = vsyncpa %s9, 0
    loop: start=0, step=1, limit=5
    $region2: #{tpu_custom_call.1} parent=1 // loop_pre_header
      _
    $region3: #{tpu_custom_call.1} parent=1 // loop_header
      %s12 = sphi 0, %s16
      %p13 = scmp.ge.s32.totalorder %s12, 5
      %s22 = sphi 0, %s24
      %s25 = sphi 0, %s22
      %s26 = sphi 0, %s25
      %s42 = sphi 0, %s26
      %s46 = sphi 0, %s46
      %s48 = sphi 0, %s46
      %s49 = sphi 0, %s48
      %s63 = sphi 0, %s49
      %s67 = sphi 0, %s67
      %s69 = sphi 0, %s67
      %s70 = sphi 0, %s69
      %s84 = sphi 0, %s70
      %s90 = sphi 0, %s92
      %s93 = sphi 0, %s90
      %s94 = sphi 0, %s93
      %s110 = sphi 0, %s94
    $region4: #{tpu_custom_call.1} parent=1 // loop_header_branch
      %15 = sbr.rel (%p13) target = $region8
    $region5: #{tpu_custom_call.1} parent=1 // loop_body
      %s17 = ssub.s32 %s12, 1
      %s18 = ssub.s32 %s12, 2
      %s19 = sadd.s32 %s12, 1
      %s20 = ssub.s32 %s12, %s19
      %p21 = scmp.eq.s32.totalorder %s20, 0
      %s23 = sadd.s32 %s22, 1
      %s24 = scalar_select %p21, %s22, %s23
      %p27 = pneg %p21
      %p28 = scmp.eq.s32.totalorder %s12, 2
      %p29 = por %p27, %p28
      %p30 = scmp.ne.s32.totalorder %s22, %s25
      %p31 = scmp.eq.s32.totalorder %s12, 0
      %p32 = por %p30, %p31
      %p33 = scmp.ne.s32.totalorder %s22, %s25
      %p34 = scmp.eq.s32.totalorder %s17, 2
      %p35 = por %p33, %p34
      %p36 = scmp.ne.s32.totalorder %s25, %s26
      %p37 = scmp.eq.s32.totalorder %s17, 0
      %p38 = por %p36, %p37
      %p39 = scmp.ne.s32.totalorder %s25, %s26
      %p40 = scmp.eq.s32.totalorder %s18, 2
      %p41 = por %p39, %p40
      %p43 = scmp.ne.s32.totalorder %s26, %s42
      %p44 = scmp.eq.s32.totalorder %s18, 0
      %p45 = por %p43, %p44
      %s47 = sadd.s32 %s46, 1
      %p50 = scmp.eq.s32.totalorder %s12, 2
      %p51 = scmp.ne.s32.totalorder %s46, %s48
      %p52 = scmp.eq.s32.totalorder %s12, 0
      %p53 = por %p51, %p52
      %p54 = scmp.ne.s32.totalorder %s46, %s48
      %p55 = scmp.eq.s32.totalorder %s17, 2
      %p56 = por %p54, %p55
      %p57 = scmp.ne.s32.totalorder %s48, %s49
      %p58 = scmp.eq.s32.totalorder %s17, 0
      %p59 = por %p57, %p58
      %p60 = scmp.ne.s32.totalorder %s48, %s49
      %p61 = scmp.eq.s32.totalorder %s18, 2
      %p62 = por %p60, %p61
      %p64 = scmp.ne.s32.totalorder %s49, %s63
      %p65 = scmp.eq.s32.totalorder %s18, 0
      %p66 = por %p64, %p65
      %s68 = sadd.s32 %s67, 1
      %p71 = scmp.eq.s32.totalorder %s12, 2
      %p72 = scmp.ne.s32.totalorder %s67, %s69
      %p73 = scmp.eq.s32.totalorder %s12, 0
      %p74 = por %p72, %p73
      %p75 = scmp.ne.s32.totalorder %s67, %s69
      %p76 = scmp.eq.s32.totalorder %s17, 2
      %p77 = por %p75, %p76
      %p78 = scmp.ne.s32.totalorder %s69, %s70
      %p79 = scmp.eq.s32.totalorder %s17, 0
      %p80 = por %p78, %p79
      %p81 = scmp.ne.s32.totalorder %s69, %s70
      %p82 = scmp.eq.s32.totalorder %s18, 2
      %p83 = por %p81, %p82
      %p85 = scmp.ne.s32.totalorder %s70, %s84
      %p86 = scmp.eq.s32.totalorder %s18, 0
      %p87 = por %p85, %p86
      %s88 = ssub.s32 %s12, %s19
      %p89 = scmp.eq.s32.totalorder %s88, 0
      %s91 = sadd.s32 %s90, 1
      %s92 = scalar_select %p89, %s90, %s91
      %p95 = pneg %p89
      %p96 = scmp.eq.s32.totalorder %s12, 2
      %p97 = por %p95, %p96
      %p98 = scmp.ne.s32.totalorder %s90, %s93
      %p99 = scmp.eq.s32.totalorder %s12, 0
      %p100 = por %p98, %p99
      %p101 = scmp.ne.s32.totalorder %s90, %s93
      %p102 = scmp.eq.s32.totalorder %s17, 2
      %p103 = por %p101, %p102
      %p104 = scmp.ne.s32.totalorder %s93, %s94
      %p105 = scmp.eq.s32.totalorder %s17, 0
      %p106 = por %p104, %p105
      %p107 = scmp.ne.s32.totalorder %s93, %s94
      %p108 = scmp.eq.s32.totalorder %s18, 2
      %p109 = por %p107, %p108
      %p111 = scmp.ne.s32.totalorder %s94, %s110
      %p112 = scmp.eq.s32.totalorder %s18, 0
      %p113 = por %p111, %p112
      %p114 = scmp.le.s32.totalorder 1, %s12
      %p115 = scmp.lt.s32.totalorder %s12, 4
      %p116 = pnand %p114, %p115
      %p117 = pneg %p116
      // Predicated region
      $region9: #{tpu_custom_call.1} parent=5 // pred_check
        _
      $region10: #{tpu_custom_call.1} parent=5 // pred_check_branch
        %119 = sbr.rel (%p116) target = $region12
      $region11: #{tpu_custom_call.1} parent=5 // pred_region
        %s120 = ssub.s32 %s12, 1
        // Predicated region
        $region13: #{tpu_custom_call.1} parent=11 // pred_check
          %p121 = pneg %p59
        $region14: #{tpu_custom_call.1} parent=11 // pred_check_branch
          %123 = sbr.rel (%p121) target = $region16
        $region15: #{tpu_custom_call.1} parent=11 // pred_region
          _
        $region16: #{tpu_custom_call.1} parent=11 // pred_fallthru
          _
        // Predicated region
        $region17: #{tpu_custom_call.1} parent=11 // pred_check
          %p124 = pneg %p80
        $region18: #{tpu_custom_call.1} parent=11 // pred_check_branch
          %126 = sbr.rel (%p124) target = $region20
        $region19: #{tpu_custom_call.1} parent=11 // pred_region
          _
        $region20: #{tpu_custom_call.1} parent=11 // pred_fallthru
          _
      $region12: #{tpu_custom_call.1} parent=5 // pred_fallthru
        _
      %p127 = scmp.lt.s32.totalorder %s12, 3
      // Predicated region
      $region21: #{tpu_custom_call.1} parent=5 // pred_check
        %p128 = pneg %p127
      $region22: #{tpu_custom_call.1} parent=5 // pred_check_branch
        %130 = sbr.rel (%p128) target = $region24
      $region23: #{tpu_custom_call.1} parent=5 // pred_region
        // Predicated region
        $region25: #{tpu_custom_call.1} parent=23 // pred_check
          %p131 = pneg %p32
        $region26: #{tpu_custom_call.1} parent=23 // pred_check_branch
          %133 = sbr.rel (%p131) target = $region28
        $region27: #{tpu_custom_call.1} parent=23 // pred_region
          %s134 = smul.u32 3, %s12
          %s135 = ssub.s32 7, %s134
          %p136 = scmp.lt.s32.totalorder %s135, 3
          %s137 = scalar_select %p136, %s135, 3
          %s138 = smul.u32 128, %s137
          %p139 = scmp.lt.s32.totalorder %s134, 6
          %s140 = scalar_select %p139, %s134, 6
          %s141 = smul.addr %s140, 8
          %s142 = scalar_lea.vmem %s0, %s141
          %s143 = smul.u32 3, %s12
          %s144 = ssub.s32 7, %s143
          %p145 = scmp.lt.s32.totalorder %s144, 3
          %s146 = scalar_select %p145, %s144, 3
          %s147 = smul.u32 128, %s146
        $region28: #{tpu_custom_call.1} parent=23 // pred_fallthru
          _
      $region24: #{tpu_custom_call.1} parent=5 // pred_fallthru
        _
      %p148 = scmp.le.s32.totalorder 1, %s12
      %p149 = scmp.lt.s32.totalorder %s12, 4
      %p150 = pnand %p148, %p149
      %p151 = pneg %p150
      // Predicated region
      $region29: #{tpu_custom_call.1} parent=5 // pred_check
        _
      $region30: #{tpu_custom_call.1} parent=5 // pred_check_branch
        %153 = sbr.rel (%p150) target = $region32
      $region31: #{tpu_custom_call.1} parent=5 // pred_region
        %s154 = ssub.s32 %s12, 1
        %s155 = smul.u32 3, %s17
        %s156 = ssub.s32 7, %s155
        %p157 = scmp.lt.s32.totalorder %s156, 3
        %s158 = scalar_select %p157, %s156, 3
        %s159 = smul.u32 128, %s158
        %p160 = scmp.lt.s32.totalorder %s155, 6
        %s161 = scalar_select %p160, %s155, 6
        %s162 = smul.addr %s161, 8
        %s163 = scalar_lea.vmem %s0, %s162
        %p164 = pneg %p38
        %p165 = pneg %p35
        %p166 = pneg %p59
        %p167 = pneg %p56
        %p168 = pneg %p80
        %p169 = pneg %p77
        %p170 = pneg %p106
        %p171 = pneg %p103
        %s172 = sand.u32 %s93, 1
        %s173 = scalar_lea.sflag [#allocation3], %s172
        %s174 = sand.u32 %s93, 1
        %s175 = smul.addr %s174, 24
        %s176 = scalar_lea.vmem [#allocation2], %s175
        %s177 = smul.u32 3, %s17
        %s178 = ssub.s32 7, %s177
        %p179 = scmp.lt.s32.totalorder %s178, 3
        %s180 = scalar_select %p179, %s178, 3
        %s181 = smul.u32 128, %s180
        %p182 = scmp.lt.s32.totalorder %s177, 6
        %s183 = scalar_select %p182, %s177, 6
        %s184 = smul.addr %s183, 8
        %s185 = scalar_lea.vmem %s0, %s184
        %s186 = smul.u32 3, %s17
        %s187 = ssub.s32 7, %s186
        %p188 = scmp.lt.s32.totalorder %s187, 3
        %s189 = scalar_select %p188, %s187, 3
        %s190 = smul.u32 128, %s189
        %s191 = smul.u32 3, %s17
        %s192 = ssub.s32 7, %s191
        %p193 = scmp.lt.s32.totalorder %s192, 3
        %s194 = scalar_select %p193, %s192, 3
        %s195 = smul.u32 128, %s194
        %v196 = vld [vmem:[%s185] sm:$0xff]
        %v197 = vld [vmem:[%s185 + $0x8] sm:$0xff]
        %v198 = vld [vmem:[%s185 + $0x10] sm:$0xff]
        %v199 = vld [vmem:[%s1] sm:$0xff]
        %v200 = vld [vmem:[%s1 + $0x8] sm:$0xff]
        %v201 = vld [vmem:[%s2] sm:$0x1]
        %v203 = vlaneseq
        %v204 = vshrl.u32 %v203, 7
        %v205 = vsub.s32 0, %v204
        %v206 = vrot.slane %v201, %v205
        %vm208 = vcmask 130048
        %v210 = vsel %vm208, %v196, 0
        %v213 = vsel %vm208, %v197, 0
        %v216 = vsel %vm208, %v198, 0
        %218 = vmatprep.subr.mxu0 0.0
        %219 = vmatpush1.msra.mxu0 %v199
        %220 = vmatprep.subr.mxu0 0.0
        %221 = vmatpush1.msra.mxu0 %v200
        %222 = vmatprep.subr.mxu0 0.0
        %223 = vmatpush1.msra.mxu0 0.0
        %224 = vmatprep.subr.mxu0 0.0
        %225 = vmatpush1.msra.mxu0 0.0
        %226 = vmatprep.subr.mxu0 0.0
        %227 = vmatpush1.msra.mxu0 0.0
        %228 = vmatprep.subr.mxu0 0.0
        %229 = vmatpush1.msra.mxu0 0.0
        %230 = vmatprep.subr.mxu0 0.0
        %231 = vmatpush1.msra.mxu0 0.0
        %232 = vmatprep.subr.mxu0 0.0
        %233 = vmatpush1.msra.mxu0 0.0
        %234 = vmatprep.subr.mxu0 0.0
        %235 = vmatpush1.msra.mxu0 0.0
        %236 = vmatprep.subr.mxu0 0.0
        %237 = vmatpush1.msra.mxu0 0.0
        %238 = vmatprep.subr.mxu0 0.0
        %239 = vmatpush1.msra.mxu0 0.0
        %240 = vmatprep.subr.mxu0 0.0
        %241 = vmatpush1.msra.mxu0 0.0
        %242 = vmatprep.subr.mxu0 0.0
        %243 = vmatpush1.msra.mxu0 0.0
        %244 = vmatprep.subr.mxu0 0.0
        %245 = vmatpush1.msra.mxu0 0.0
        %246 = vmatprep.subr.mxu0 0.0
        %247 = vmatpush1.msra.mxu0 0.0
        %248 = vmatprep.subr.mxu0 0.0
        %249 = vmatpush1.msra.mxu0 0.0
        %250 = vmatprep.subr.mxu0 0.0
        %251 = vmatpush1.msra.mxu0 0.0
        %252 = vmatprep.subr.mxu0 0.0
        %253 = vmatpush1.msra.mxu0 0.0
        %254 = vmatprep.subr.mxu0 0.0
        %255 = vmatpush1.msra.mxu0 0.0
        %256 = vmatprep.subr.mxu0 0.0
        %257 = vmatpush1.msra.mxu0 0.0
        %258 = vmatprep.subr.mxu0 0.0
        %259 = vmatpush1.msra.mxu0 0.0
        %260 = vmatprep.subr.mxu0 0.0
        %261 = vmatpush1.msra.mxu0 0.0
        %262 = vmatprep.subr.mxu0 0.0
        %263 = vmatpush1.msra.mxu0 0.0
        %264 = vmatprep.subr.mxu0 0.0
        %265 = vmatpush1.msra.mxu0 0.0
        %266 = vmatprep.subr.mxu0 0.0
        %267 = vmatpush1.msra.mxu0 0.0
        %268 = vmatprep.subr.mxu0 0.0
        %269 = vmatpush1.msra.mxu0 0.0
        %270 = vmatprep.subr.mxu0 0.0
        %271 = vmatpush1.msra.mxu0 0.0
        %272 = vmatprep.subr.mxu0 0.0
        %273 = vmatpush1.msra.mxu0 0.0
        %274 = vmatprep.subr.mxu0 0.0
        %275 = vmatpush1.msra.mxu0 0.0
        %276 = vmatprep.subr.mxu0 0.0
        %277 = vmatpush1.msra.mxu0 0.0
        %278 = vmatprep.subr.mxu0 0.0
        %279 = vmatpush1.msra.mxu0 0.0
        %280 = vmatprep.subr.mxu0 0.0
        %281 = vmatpush1.msra.mxu0 0.0
        %282 = vmatprep.mubr.f32.mxu0 0.0
        %283 = vmatmul.mubr.f32.gmra.mrb[0].mxu0 %v210
        %v284 = vpop.f32.mrb[0].mxu0
        %v285 = vadd.f32 %v206, %v284
        %v286 = vpop.f32.mrb[0].mxu0
        %287 = vmatprep.mubr.f32.mxu0 0.0
        %288 = vmatmul.mubr.f32.gmra.mrb[0].mxu0 %v213
        %v289 = vpop.f32.mrb[0].mxu0
        %v290 = vadd.f32 %v206, %v289
        %v291 = vpop.f32.mrb[0].mxu0
        %292 = vmatprep.mubr.f32.mxu0 0.0
        %293 = vmatmul.mubr.f32.gmra.mrb[0].mxu0 %v216
        %v294 = vpop.f32.mrb[0].mxu0
        %v295 = vadd.f32 %v206, %v294
        %v296 = vpop.f32.mrb[0].mxu0
        %297 = vdwg.mxu0
        %v298 = vand.u32 2147483647, %v285
        %vm299 = vcmp.le.f32.partialorder %v298, 0.7853982
        %vm300 = vcmp.lt.s32.totalorder %v285, 0
        %v301 = vand.u32 %v285, 2139095040
        %v302 = vshrl.u32 %v301, 23
        %v303 = vsub.s32 %v302, 127
        %v304 = vand.u32 2147483647, %v285
        %v305 = vand.u32 %v304, 8388607
        %v306 = vor.u32 %v305, 8388608
        %v307 = vsub.s32 0, %v306
        %v308 = vadd.s32 %v303, 1
        %vm309 = vcmp.gt.s32.totalorder %v308, 0
        %v310 = vsel %vm309, %v308, 0
        %v311 = vshrl.u32 %v310, 5
        %v312 = vand.u32 %v310, 31
        %v313 = vsub.s32 32, %v312
        %v314 = vshrl.u32 683565275, %v313
        %v315 = vshll.u32 683565275, %v312
        %v316 = vshrl.u32 2475754826, %v313
        %v317 = vor.u32 %v315, %v316
        %v318 = vshll.u32 2475754826, %v312
        %v319 = vshrl.u32 2131351028, %v313
        %v320 = vor.u32 %v318, %v319
        %v321 = vshll.u32 2131351028, %v312
        %v322 = vshrl.u32 2102212464, %v313
        %v323 = vor.u32 %v321, %v322
        %v324 = vshll.u32 2102212464, %v312
        %v325 = vshrl.u32 920167782, %v313
        %v326 = vor.u32 %v324, %v325
        %v327 = vshll.u32 920167782, %v312
        %v328 = vshrl.u32 1326507024, %v313
        %v329 = vor.u32 %v327, %v328
        %vm330 = vcmp.lt.s32.totalorder %v311, 1
        %vm331 = vcmp.lt.s32.totalorder %v311, 2
        %vm332 = vcmp.lt.s32.totalorder %v311, 3
        %vm333 = vcmp.lt.s32.totalorder %v311, 4
        %v334 = vsel %vm330, %v314, %v317
        %v335 = vsel %vm333, %v323, 2102212464
        %v336 = vsel %vm332, %v320, %v335
        %v337 = vsel %vm331, %v334, %v336
        %v338 = vsel %vm330, %v317, %v320
        %v339 = vsel %vm333, %v326, 920167782
        %v340 = vsel %vm332, %v323, %v339
        %v341 = vsel %vm331, %v338, %v340
        %v342 = vsel %vm330, %v320, %v323
        %v343 = vsel %vm333, %v329, 1326507024
        %v344 = vsel %vm332, %v326, %v343
        %v345 = vsel %vm331, %v342, %v344
        %v346 = vshll.u32 %v306, 8
        %v347 = vmul.u32.u64.compose %v346, %v345
        %v348 = vextract.low.u32 %v347
        %v349 = vextract.high.u32 %v347
        %v350 = vmul.u32.u64.compose %v346, %v341
        %v351 = vextract.low.u32 %v350
        %v352 = vextract.high.u32 %v350
        %v353 = vmul.u32 %v346, %v337
        %v354 = vadd.s32 %v349, %v351
        %vm355 = vc.u32 %v349, %v351
        %v356 = vadd.s32 %v352, 1
        %v357 = vsel %vm355, %v356, %v352
        %v358 = vadd.s32 %v353, %v357
        %v359 = vadd.s32 %v358, 536870912
        %v360 = vshrl.u32 %v359, 30
        %v361 = vshll.u32 %v360, 30
        %v362 = vsub.s32 %v358, %v361
        %vm363 = vcmp.lt.s32.totalorder %v362, 0
        %v364 = vsub.s32 0, %v362
        %v365 = vsel %vm363, %v364, %v362
        %v366 = vclz %v365
        %v367 = vsub.s32 %v366, 2
        %vm368 = vcmp.gt.s32.totalorder 0, %v367
        %v369 = vsel %vm368, 0, %v367
        %v370 = vsub.s32 32, %v369
        %v371 = vshll.u32 %v362, %v369
        %v372 = vshrl.u32 %v354, %v370
        %v373 = vor.u32 %v371, %v372
        %v374 = vsub.s32 4294967266, %v369
        %v375 = vadd.s32 %v374, 127
        %v376 = vshll.u32 %v375, 23
        %v377 = vor.u32 4788187, %v376
        %v378 = vand.u32 2147483647, %v377
        %v380 = vcvt.s32.f32 %v373
        %v381 = vmul.f32 %v380, %v378
        %v382 = vxor.u32 %v381, 2147483648
        %v383 = vsel %vm300, %v382, %v381
        %v384 = vsub.s32 4, %v360
        %v385 = vsel %vm300, %v384, %v360
        %v386 = vsel %vm299, %v285, %v383
        %v387 = vsel %vm299, 0, %v385
        %v388 = vcosq.f32.pop %v386
        %v389 = vsinq.f32.pop %v386
        %vm390 = vweird.f32 %v285
        %v391 = vadd.s32 %v387, 3
        %v392 = vand.u32 %v391, 3
        %vm393 = vcmp.lt.s32.totalorder %v392, 2
        %vm394 = vcmp.eq.s32.totalorder %v392, 0
        %v395 = vxor.u32 %v389, 2147483648
        %v396 = vsel %vm394, %v388, %v395
        %vm397 = vcmp.eq.s32.totalorder %v392, 2
        %v398 = vxor.u32 %v388, 2147483648
        %v399 = vsel %vm397, %v398, %v389
        %v400 = vsel %vm393, %v396, %v399
        %v401 = vsel %vm390, nan, %v400
        %v402 = vand.u32 2147483647, %v290
        %vm403 = vcmp.le.f32.partialorder %v402, 0.7853982
        %vm404 = vcmp.lt.s32.totalorder %v290, 0
        %v405 = vand.u32 %v290, 2139095040
        %v406 = vshrl.u32 %v405, 23
        %v407 = vsub.s32 %v406, 127
        %v408 = vand.u32 2147483647, %v290
        %v409 = vand.u32 %v408, 8388607
        %v410 = vor.u32 %v409, 8388608
        %v411 = vsub.s32 0, %v410
        %v412 = vadd.s32 %v407, 1
        %vm413 = vcmp.gt.s32.totalorder %v412, 0
        %v414 = vsel %vm413, %v412, 0
        %v415 = vshrl.u32 %v414, 5
        %v416 = vand.u32 %v414, 31
        %v417 = vsub.s32 32, %v416
        %v418 = vshrl.u32 683565275, %v417
        %v419 = vshll.u32 683565275, %v416
        %v420 = vshrl.u32 2475754826, %v417
        %v421 = vor.u32 %v419, %v420
        %v422 = vshll.u32 2475754826, %v416
        %v423 = vshrl.u32 2131351028, %v417
        %v424 = vor.u32 %v422, %v423
        %v425 = vshll.u32 2131351028, %v416
        %v426 = vshrl.u32 2102212464, %v417
        %v427 = vor.u32 %v425, %v426
        %v428 = vshll.u32 2102212464, %v416
        %v429 = vshrl.u32 920167782, %v417
        %v430 = vor.u32 %v428, %v429
        %v431 = vshll.u32 920167782, %v416
        %v432 = vshrl.u32 1326507024, %v417
        %v433 = vor.u32 %v431, %v432
        %vm434 = vcmp.lt.s32.totalorder %v415, 1
        %vm435 = vcmp.lt.s32.totalorder %v415, 2
        %vm436 = vcmp.lt.s32.totalorder %v415, 3
        %vm437 = vcmp.lt.s32.totalorder %v415, 4
        %v438 = vsel %vm434, %v418, %v421
        %v439 = vsel %vm437, %v427, 2102212464
        %v440 = vsel %vm436, %v424, %v439
        %v441 = vsel %vm435, %v438, %v440
        %v442 = vsel %vm434, %v421, %v424
        %v443 = vsel %vm437, %v430, 920167782
        %v444 = vsel %vm436, %v427, %v443
        %v445 = vsel %vm435, %v442, %v444
        %v446 = vsel %vm434, %v424, %v427
        %v447 = vsel %vm437, %v433, 1326507024
        %v448 = vsel %vm436, %v430, %v447
        %v449 = vsel %vm435, %v446, %v448
        %v450 = vshll.u32 %v410, 8
        %v451 = vmul.u32.u64.compose %v450, %v449
        %v452 = vextract.low.u32 %v451
        %v453 = vextract.high.u32 %v451
        %v454 = vmul.u32.u64.compose %v450, %v445
        %v455 = vextract.low.u32 %v454
        %v456 = vextract.high.u32 %v454
        %v457 = vmul.u32 %v450, %v441
        %v458 = vadd.s32 %v453, %v455
        %vm459 = vc.u32 %v453, %v455
        %v460 = vadd.s32 %v456, 1
        %v461 = vsel %vm459, %v460, %v456
        %v462 = vadd.s32 %v457, %v461
        %v463 = vadd.s32 %v462, 536870912
        %v464 = vshrl.u32 %v463, 30
        %v465 = vshll.u32 %v464, 30
        %v466 = vsub.s32 %v462, %v465
        %vm467 = vcmp.lt.s32.totalorder %v466, 0
        %v468 = vsub.s32 0, %v466
        %v469 = vsel %vm467, %v468, %v466
        %v470 = vclz %v469
        %v471 = vsub.s32 %v470, 2
        %vm472 = vcmp.gt.s32.totalorder 0, %v471
        %v473 = vsel %vm472, 0, %v471
        %v474 = vsub.s32 32, %v473
        %v475 = vshll.u32 %v466, %v473
        %v476 = vshrl.u32 %v458, %v474
        %v477 = vor.u32 %v475, %v476
        %v478 = vsub.s32 4294967266, %v473
        %v479 = vadd.s32 %v478, 127
        %v480 = vshll.u32 %v479, 23
        %v481 = vor.u32 4788187, %v480
        %v482 = vand.u32 2147483647, %v481
        %v484 = vcvt.s32.f32 %v477
        %v485 = vmul.f32 %v484, %v482
        %v486 = vxor.u32 %v485, 2147483648
        %v487 = vsel %vm404, %v486, %v485
        %v488 = vsub.s32 4, %v464
        %v489 = vsel %vm404, %v488, %v464
        %v490 = vsel %vm403, %v290, %v487
        %v491 = vsel %vm403, 0, %v489
        %v492 = vcosq.f32.pop %v490
        %v493 = vsinq.f32.pop %v490
        %vm494 = vweird.f32 %v290
        %v495 = vadd.s32 %v491, 3
        %v496 = vand.u32 %v495, 3
        %vm497 = vcmp.lt.s32.totalorder %v496, 2
        %vm498 = vcmp.eq.s32.totalorder %v496, 0
        %v499 = vxor.u32 %v493, 2147483648
        %v500 = vsel %vm498, %v492, %v499
        %vm501 = vcmp.eq.s32.totalorder %v496, 2
        %v502 = vxor.u32 %v492, 2147483648
        %v503 = vsel %vm501, %v502, %v493
        %v504 = vsel %vm497, %v500, %v503
        %v505 = vsel %vm494, nan, %v504
        %v506 = vand.u32 2147483647, %v295
        %vm507 = vcmp.le.f32.partialorder %v506, 0.7853982
        %vm508 = vcmp.lt.s32.totalorder %v295, 0
        %v509 = vand.u32 %v295, 2139095040
        %v510 = vshrl.u32 %v509, 23
        %v511 = vsub.s32 %v510, 127
        %v512 = vand.u32 2147483647, %v295
        %v513 = vand.u32 %v512, 8388607
        %v514 = vor.u32 %v513, 8388608
        %v515 = vsub.s32 0, %v514
        %v516 = vadd.s32 %v511, 1
        %vm517 = vcmp.gt.s32.totalorder %v516, 0
        %v518 = vsel %vm517, %v516, 0
        %v519 = vshrl.u32 %v518, 5
        %v520 = vand.u32 %v518, 31
        %v521 = vsub.s32 32, %v520
        %v522 = vshrl.u32 683565275, %v521
        %v523 = vshll.u32 683565275, %v520
        %v524 = vshrl.u32 2475754826, %v521
        %v525 = vor.u32 %v523, %v524
        %v526 = vshll.u32 2475754826, %v520
        %v527 = vshrl.u32 2131351028, %v521
        %v528 = vor.u32 %v526, %v527
        %v529 = vshll.u32 2131351028, %v520
        %v530 = vshrl.u32 2102212464, %v521
        %v531 = vor.u32 %v529, %v530
        %v532 = vshll.u32 2102212464, %v520
        %v533 = vshrl.u32 920167782, %v521
        %v534 = vor.u32 %v532, %v533
        %v535 = vshll.u32 920167782, %v520
        %v536 = vshrl.u32 1326507024, %v521
        %v537 = vor.u32 %v535, %v536
        %vm538 = vcmp.lt.s32.totalorder %v519, 1
        %vm539 = vcmp.lt.s32.totalorder %v519, 2
        %vm540 = vcmp.lt.s32.totalorder %v519, 3
        %vm541 = vcmp.lt.s32.totalorder %v519, 4
        %v542 = vsel %vm538, %v522, %v525
        %v543 = vsel %vm541, %v531, 2102212464
        %v544 = vsel %vm540, %v528, %v543
        %v545 = vsel %vm539, %v542, %v544
        %v546 = vsel %vm538, %v525, %v528
        %v547 = vsel %vm541, %v534, 920167782
        %v548 = vsel %vm540, %v531, %v547
        %v549 = vsel %vm539, %v546, %v548
        %v550 = vsel %vm538, %v528, %v531
        %v551 = vsel %vm541, %v537, 1326507024
        %v552 = vsel %vm540, %v534, %v551
        %v553 = vsel %vm539, %v550, %v552
        %v554 = vshll.u32 %v514, 8
        %v555 = vmul.u32.u64.compose %v554, %v553
        %v556 = vextract.low.u32 %v555
        %v557 = vextract.high.u32 %v555
        %v558 = vmul.u32.u64.compose %v554, %v549
        %v559 = vextract.low.u32 %v558
        %v560 = vextract.high.u32 %v558
        %v561 = vmul.u32 %v554, %v545
        %v562 = vadd.s32 %v557, %v559
        %vm563 = vc.u32 %v557, %v559
        %v564 = vadd.s32 %v560, 1
        %v565 = vsel %vm563, %v564, %v560
        %v566 = vadd.s32 %v561, %v565
        %v567 = vadd.s32 %v566, 536870912
        %v568 = vshrl.u32 %v567, 30
        %v569 = vshll.u32 %v568, 30
        %v570 = vsub.s32 %v566, %v569
        %vm571 = vcmp.lt.s32.totalorder %v570, 0
        %v572 = vsub.s32 0, %v570
        %v573 = vsel %vm571, %v572, %v570
        %v574 = vclz %v573
        %v575 = vsub.s32 %v574, 2
        %vm576 = vcmp.gt.s32.totalorder 0, %v575
        %v577 = vsel %vm576, 0, %v575
        %v578 = vsub.s32 32, %v577
        %v579 = vshll.u32 %v570, %v577
        %v580 = vshrl.u32 %v562, %v578
        %v581 = vor.u32 %v579, %v580
        %v582 = vsub.s32 4294967266, %v577
        %v583 = vadd.s32 %v582, 127
        %v584 = vshll.u32 %v583, 23
        %v585 = vor.u32 4788187, %v584
        %v586 = vand.u32 2147483647, %v585
        %v588 = vcvt.s32.f32 %v581
        %v589 = vmul.f32 %v588, %v586
        %v590 = vxor.u32 %v589, 2147483648
        %v591 = vsel %vm508, %v590, %v589
        %v592 = vsub.s32 4, %v568
        %v593 = vsel %vm508, %v592, %v568
        %v594 = vsel %vm507, %v295, %v591
        %v595 = vsel %vm507, 0, %v593
        %v596 = vcosq.f32.pop %v594
        %v597 = vsinq.f32.pop %v594
        %vm598 = vweird.f32 %v295
        %v599 = vadd.s32 %v595, 3
        %v600 = vand.u32 %v599, 3
        %vm601 = vcmp.lt.s32.totalorder %v600, 2
        %vm602 = vcmp.eq.s32.totalorder %v600, 0
        %v603 = vxor.u32 %v597, 2147483648
        %v604 = vsel %vm602, %v596, %v603
        %vm605 = vcmp.eq.s32.totalorder %v600, 2
        %v606 = vxor.u32 %v596, 2147483648
        %v607 = vsel %vm605, %v606, %v597
        %v608 = vsel %vm601, %v604, %v607
        %v609 = vsel %vm598, nan, %v608
        %610 = vst [vmem:[%s176] sm:$0xff] %v401
        %611 = vst [vmem:[%s176 + $0x8] sm:$0xff] %v505
        %612 = vst [vmem:[%s176 + $0x10] sm:$0xff] %v609
        %s613 = sand.u32 %s93, 1
        %s614 = scalar_lea.sflag [#allocation3], %s613
        %s615 = sand.u32 %s93, 1
        %s616 = smul.addr %s615, 24
        %s617 = scalar_lea.vmem [#allocation2], %s616
        // Predicated region
        $region33: #{tpu_custom_call.1} parent=31 // pred_check
          %p618 = pneg %p103
        $region34: #{tpu_custom_call.1} parent=31 // pred_check_branch
          %620 = sbr.rel (%p618) target = $region36
        $region35: #{tpu_custom_call.1} parent=31 // pred_region
          %s621 = smul.u32 3, %s17
          %s622 = ssub.s32 7, %s621
          %p623 = scmp.lt.s32.totalorder %s622, 3
          %s624 = scalar_select %p623, %s622, 3
          %s625 = smul.u32 128, %s624
          %s627 = ssub.s32 384, %s625
          %628 = vsyncadd %s614, %s627
          %p629 = scmp.ne.s32.totalorder 0, %s625
          %s630 = smul.addr %s621, 128
          %s631 = scalar_lea.hbm %s3, %s630
          %s632 = smul.u32 8, %s624
          %s633 = sshll.u32 %s617, 4
          %s634 = int_to_ptr.vmem [resolvable:$true] %s633
          %s635 = sshll.u32 %s632, 4
          %639 = dma.vmem_to_hbm [thread:$0]  (%p629), %s634, %s635, %s631, %s614, 128, 128, 8
        $region36: #{tpu_custom_call.1} parent=31 // pred_fallthru
          _
      $region32: #{tpu_custom_call.1} parent=5 // pred_fallthru
        _
      %p640 = scmp.le.s32.totalorder 2, %s12
      // Predicated region
      $region37: #{tpu_custom_call.1} parent=5 // pred_check
        %p641 = pneg %p640
      $region38: #{tpu_custom_call.1} parent=5 // pred_check_branch
        %643 = sbr.rel (%p641) target = $region40
      $region39: #{tpu_custom_call.1} parent=5 // pred_region
        %s644 = ssub.s32 %s12, 2
        // Predicated region
        $region41: #{tpu_custom_call.1} parent=39 // pred_check
          %p645 = pneg %p109
        $region42: #{tpu_custom_call.1} parent=39 // pred_check_branch
          %647 = sbr.rel (%p645) target = $region44
        $region43: #{tpu_custom_call.1} parent=39 // pred_region
          %s648 = sand.u32 %s94, 1
          %s649 = scalar_lea.sflag [#allocation3], %s648
          %s650 = sand.u32 %s94, 1
          %s651 = smul.addr %s650, 24
          %s652 = scalar_lea.vmem [#allocation2], %s651
          %653 = dma.done %s649, 384
        $region44: #{tpu_custom_call.1} parent=39 // pred_fallthru
          _
      $region40: #{tpu_custom_call.1} parent=5 // pred_fallthru
        _
    $region6: #{tpu_custom_call.1} parent=1 // loop_footer
      %s16 = sadd.s32 1, %s12
    $region7: #{tpu_custom_call.1} parent=1 // loop_footer_branch
      %11 = sbr.rel target = $region3
    $region8: #{tpu_custom_call.1} parent=1 // loop_exit
      _
    %654 = vsyncpa [#allocation3], 1
    %s655 = scalar_lea.sflag [#allocation3], 1
    %656 = vsyncpa %s655, 1

</llo_original>
